<compile_context>
chip_gen: v5e
topology: v5e:2x2
jax: 0.10.0
libtpu: 0.0.40
codegen_flags: <defaults>
</compile_context>

<pallas_src>
import jax
import jax.numpy as jnp
from jax.experimental import pallas as pl
from jax.experimental.pallas import tpu as pltpu

_LANE = 128
_ROW_UNIT = 32           # multiple of sublane packing for f32(8)/bf16(16)/int8(32)
_TARGET_ROWS = 4096      # 4096 x 128 x 4B = 2 MiB per f32 block


def _hswish_kernel(x_ref, o_ref):
    x = x_ref[...]
    three = jnp.asarray(3.0, x.dtype)
    zero = jnp.asarray(0.0, x.dtype)
    six = jnp.asarray(6.0, x.dtype)
    inv6 = jnp.asarray(1.0 / 6.0, x.dtype)
    # relu6(x + 3) / 6 == clamp(x + 3, 0, 6) * (1/6)
    o_ref[...] = x * (jnp.clip(x + three, zero, six) * inv6)


def _round_up(a: int, b: int) -> int:
    return ((a + b - 1) // b) * b


def _hswish_2d(x2d: jax.Array) -> jax.Array:
    rows, lane = x2d.shape
    assert lane == _LANE

    if rows <= _ROW_UNIT:
        # Tiny input: single full-extent block (block dims == array dims is
        # always a legal block shape, even if rows % 8 != 0).
        tile_rows = rows
    else:
        # Aim for >= 2 grid steps (v7x has 2 TensorCores) and <= ~2 MiB blocks,
        # rounded to a packing-friendly multiple of 32 rows.
        tile_rows = min(_TARGET_ROWS, _round_up(pl.cdiv(rows, 2), _ROW_UNIT))

    grid = (pl.cdiv(rows, tile_rows),)  # partial last block is masked by Pallas

    return pl.pallas_call(
        _hswish_kernel,
        out_shape=jax.ShapeDtypeStruct((rows, _LANE), x2d.dtype),
        grid_spec=pltpu.PrefetchScalarGridSpec(
            num_scalar_prefetch=0,
            grid=grid,
            in_specs=[pl.BlockSpec((tile_rows, _LANE), lambda i: (i, 0))],
            out_specs=pl.BlockSpec((tile_rows, _LANE), lambda i: (i, 0)),
        ),
        compiler_params=pltpu.CompilerParams(
            dimension_semantics=("parallel",)),
    )(x2d)


@jax.jit
def hswish(x: jax.Array) -> jax.Array:
    """Applies HSwish elementwise; accepts any shape (NCHW in this script)."""
    orig_shape = x.shape
    n = x.size
    if n == 0:
        return x

    if n % _LANE == 0:
        # Fast path: free reshape to a lane-dense slab, no padding copies.
        rows = n // _LANE
        out2d = _hswish_2d(x.reshape(rows, _LANE))
        return out2d.reshape(orig_shape)

    # Rare fallback (element count not a multiple of 128): pad flat to a full
    # lane row, run, and slice the tail off.  hswish(0) == 0 so padding is benign.
    n_pad = pl.cdiv(n, _LANE) * _LANE
    x_flat = jnp.pad(x.reshape(-1), (0, n_pad - n))
    out2d = _hswish_2d(x_flat.reshape(n_pad // _LANE, _LANE))
    return out2d.reshape(-1)[:n].reshape(orig_shape)


if __name__ == "__main__":
    key = jax.random.PRNGKey(0)
    # NCHW input, small shape consistent with a MobileNet activation.
    x = jax.random.normal(key, (2, 4, 16, 16), dtype=jnp.float32) * 4.0

    out = hswish(x)
    out = jax.block_until_ready(out)

    # Reference in plain JAX for sanity check.
    ref = x * (jnp.clip(x + 3.0, 0.0, 6.0) / 6.0)
    assert out.shape == x.shape and out.dtype == x.dtype
    assert jnp.allclose(out, ref, atol=1e-6, rtol=1e-6)

    print("KERNEL_OK")
</pallas_src>

<mosaic_0001>
module attributes {stable_mosaic.version = 11 : i64} {
  func.func @_hswish_kernel(%arg0: i32, %arg1: memref<16x128xf32, #tpu.memory_space<vmem>>, %arg2: memref<16x128xf32, #tpu.memory_space<vmem>>) attributes {dimension_semantics = [#tpu.dimension_semantics<parallel>], iteration_bounds = array<i64: 1>, scalar_prefetch = 0 : i64, scratch_operands = 0 : i64, tpu.core_type = #tpu.core_type<tc>, window_params = [{transform_indices = @transform_0, window_bounds = array<i64: 16, 128>}, {transform_indices = @transform_1, window_bounds = array<i64: 16, 128>}]} {
    %c0 = arith.constant 0 : index
    %c0_0 = arith.constant 0 : index
    %0 = vector.load %arg1[%c0, %c0_0] : memref<16x128xf32, #tpu.memory_space<vmem>>, vector<16x128xf32>
    %cst = arith.constant 3.000000e+00 : f32
    %1 = vector.broadcast %cst : f32 to vector<16x128xf32>
    %2 = arith.addf %0, %1 : vector<16x128xf32>
    %cst_1 = arith.constant 0.000000e+00 : f32
    %cst_2 = arith.constant 6.000000e+00 : f32
    %3 = vector.broadcast %cst_1 : f32 to vector<16x128xf32>
    %4 = arith.maximumf %3, %2 : vector<16x128xf32>
    %5 = vector.broadcast %cst_2 : f32 to vector<16x128xf32>
    %6 = arith.minimumf %5, %4 : vector<16x128xf32>
    %cst_3 = arith.constant 0.166666672 : f32
    %7 = vector.broadcast %cst_3 : f32 to vector<16x128xf32>
    %8 = arith.mulf %6, %7 : vector<16x128xf32>
    %9 = arith.mulf %0, %8 : vector<16x128xf32>
    %c0_4 = arith.constant 0 : index
    %c0_5 = arith.constant 0 : index
    %10 = vector.load %arg2[%c0_4, %c0_5] : memref<16x128xf32, #tpu.memory_space<vmem>>, vector<16x128xf32>
    tpu.vector_store %arg2[%c0_4, %c0_5], %9 {strides = array<i32>} : memref<16x128xf32, #tpu.memory_space<vmem>>, vector<16x128xf32>,
    return
  }
  func.func @transform_0(%arg0: i32) -> (i32, i32) {
    %c0_i32 = arith.constant 0 : i32
    %c0_i32_0 = arith.constant 0 : i32
    return %arg0, %c0_i32 : i32, i32
  }
  func.func @transform_1(%arg0: i32) -> (i32, i32) {
    %c0_i32 = arith.constant 0 : i32
    %c0_i32_0 = arith.constant 0 : i32
    return %arg0, %c0_i32 : i32, i32
  }
}

</mosaic_0001>

<llo_original>
// kernel: hswish.1
$region0: #{hswish.1}
  #allocation0 [shape = 'u32[]', space=smem, size = 0x4, offset = 0x4, fixed_abs, tag = 'smem constant byte address 0x4 - core index']
  #allocation1 [shape = 'u32[72,128]{1,0:T(1,128)}', space=vmem, size = 0x9000, scoped, tag = 'internal scratch']
  %s0 = inlined_call_operand.vmem [shape: f32[16,128], index: 0, kind: input, shape index: {}]
  %s1 = inlined_call_operand.vmem [shape: f32[16,128], index: 1, kind: output, shape index: {}]
  %s2 = sld [smem:[#allocation0]]
  $region14: #{hswish.1} parent=0
    _
  %s4 = ssub.s32 1, %s2
  %s5 = scalar_select 0, %s4, %s2
  // Predicated region
  $region2: #{hswish.1} parent=0 // pred_check
    _
  $region3: #{hswish.1} parent=0 // pred_check_branch
    %7 = sbr.rel (0) target = $region5
  $region4: #{hswish.1} parent=0 // pred_region
    _
  $region5: #{hswish.1} parent=0 // pred_fallthru
    _
  %v8 = vld [vmem:[%s0] sm:$0xff]
  %v9 = vld [vmem:[%s0 + $0x8] sm:$0xff]
  %v10 = vadd.f32 %v8, 3.0
  %v11 = vadd.f32 %v9, 3.0
  %v12 = vmax.f32 %v10, 0.0
  %v13 = vmax.f32 %v11, 0.0
  %v14 = vmin.f32 %v12, 6.0
  %v15 = vmin.f32 %v13, 6.0
  %v16 = vmul.f32 %v14, 0.16666667
  %v17 = vmul.f32 %v15, 0.16666667
  %v18 = vmul.f32 %v8, %v16
  %v19 = vmul.f32 %v9, %v17
  %20 = vst [vmem:[%s1] sm:$0xff] %v18
  %21 = vst [vmem:[%s1 + $0x8] sm:$0xff] %v19
  // Predicated region
  $region6: #{hswish.1} parent=0 // pred_check
    _
  $region7: #{hswish.1} parent=0 // pred_check_branch
    %23 = sbr.rel (0) target = $region9
  $region8: #{hswish.1} parent=0 // pred_region
    _
  $region9: #{hswish.1} parent=0 // pred_fallthru
    _
  // Predicated region
  $region10: #{hswish.1} parent=0 // pred_check
    _
  $region11: #{hswish.1} parent=0 // pred_check_branch
    %25 = sbr.rel (0) target = $region13
  $region12: #{hswish.1} parent=0 // pred_region
    _
  $region13: #{hswish.1} parent=0 // pred_fallthru
    _

</llo_original>
